<compile_context>
chip_gen: v5e
topology: v5e:2x2
jax: 0.10.0
libtpu: 0.0.40
codegen_flags: <defaults>
</compile_context>

<pallas_src>
import math

import jax
import jax.numpy as jnp
from jax import lax
from jax.experimental import pallas as pl
from jax.experimental.pallas import tpu as pltpu


def _round_up(v, m):
    return ((v + m - 1) // m) * m


def _pick_tm(m):
    """Lane tile over M: largest of 512/256/128 that still yields >= 2 grid
    steps (keeps both v7x TensorCores busy); floor of 128."""
    for tm in (512, 256, 128):
        if m >= 2 * tm:
            return tm
    return 128


# ----------------------------------------------------------------------------
# Kernel 1: primal conv as a transposed GEMM on the MXU.
#   o[OC, tm] = W[OC, ICK] @ patches^T[ICK, tm] + bias[OC, 1]
# Whole K and N live in one VMEM block -> no accumulator scratch, no pl.when.
# ----------------------------------------------------------------------------
def _convmm_kernel(w_ref, b_ref, p_ref, o_ref):
    o_ref[...] = (jnp.dot(w_ref[...], p_ref[...],
                          preferred_element_type=jnp.float32)
                  + b_ref[...]).astype(o_ref.dtype)


def conv_matmul_pallas(patches_t, w_flat, bias):
    """patches_t: (ICK, M), w_flat: (OC, ICK), bias: (OC,) or None.
    Returns out^T: (OC, M) float32 (lane-dense output)."""
    ick, m = patches_t.shape
    oc = w_flat.shape[0]
    dt = patches_t.dtype
    w_flat = w_flat.astype(dt)
    b_col = bias if bias is not None else jnp.zeros((oc,), dt)
    b_col = b_col.astype(jnp.float32).reshape(oc, 1)

    tm = _pick_tm(m)
    mp = _round_up(m, tm)
    if mp != m:                      # only M is rounded up; K/N stay unpadded
        patches_t = jnp.pad(patches_t, ((0, 0), (0, mp - m)))
    grid_m = mp // tm

    cost = pl.CostEstimate(
        flops=2 * oc * ick * mp,
        transcendentals=0,
        bytes_accessed=(dt.itemsize * ick * mp            # patches read once
                        + 4 * oc * mp                     # output written once
                        + grid_m * (dt.itemsize * oc * ick + 4 * oc)))  # W+bias per step

    out_t = pl.pallas_call(
        _convmm_kernel,
        out_shape=jax.ShapeDtypeStruct((oc, mp), jnp.float32),
        grid_spec=pltpu.PrefetchScalarGridSpec(
            num_scalar_prefetch=0,
            grid=(grid_m,),
            in_specs=[
                pl.BlockSpec((oc, ick), lambda i: (0, 0)),   # weight, VMEM-resident
                pl.BlockSpec((oc, 1), lambda i: (0, 0)),     # bias column
                pl.BlockSpec((ick, tm), lambda i: (0, i)),   # patches^T, M-tiled
            ],
            out_specs=pl.BlockSpec((oc, tm), lambda i: (0, i))),
        compiler_params=pltpu.CompilerParams(
            dimension_semantics=("parallel",)),
        cost_estimate=cost,
    )(w_flat, b_col, patches_t)
    return out_t[:, :m]


# ----------------------------------------------------------------------------
# Kernel 2: derivative tensor ret_d written directly into its final layout.
# For one batch element, derivative row d of ret_d is
#   d = c*ICK + k  (weight derivs): ret_d[d, c_out, :] = (c == c_out) * patch[k, :]
#   d = OC*ICK + c (bias derivs):   ret_d[d, c_out, :] = (c == c_out)
# i.e. a block-diagonal scatter of the im2col patches plus an identity block;
# no matmul against a one-hot seed, single HBM write of the output.
# ----------------------------------------------------------------------------
def _retd_kernel(pat_ref, o_ref):
    ick, hw = pat_ref.shape[1], pat_ref.shape[2]
    oc = o_ref.shape[2]
    one = jnp.ones((), o_ref.dtype)
    zero = jnp.zeros((), o_ref.dtype)
    eye = jnp.where(lax.broadcasted_iota(jnp.int32, (oc, oc), 0) ==
                    lax.broadcasted_iota(jnp.int32, (oc, oc), 1), one, zero)
    pat = pat_ref[...][:, :, None, :]                        # (1, ICK, 1, HW)
    for c in range(oc):                                      # static unroll, OC small
        o_ref[:, c * ick:(c + 1) * ick, :, :] = pat * eye[c][None, None, :, None]
    if o_ref.shape[1] == oc * ick + oc:                      # bias-derivative rows
        o_ref[:, oc * ick:, :, :] = jnp.broadcast_to(
            eye[None, :, :, None], (1, oc, oc, hw))


def retd_pallas(pat, oc, with_bias=True):
    """pat: (B, ICK, Ho*Wo).  Returns (B, total_dervs, OC, Ho*Wo) float-typed."""
    b, ick, hw = pat.shape
    total = oc * ick + (oc if with_bias else 0)
    cost = pl.CostEstimate(
        flops=b * oc * ick * oc * hw,
        transcendentals=0,
        bytes_accessed=pat.dtype.itemsize * (b * ick * hw + b * total * oc * hw))
    return pl.pallas_call(
        _retd_kernel,
        out_shape=jax.ShapeDtypeStruct((b, total, oc, hw), pat.dtype),
        grid_spec=pltpu.PrefetchScalarGridSpec(
            num_scalar_prefetch=0,
            grid=(b,),
            in_specs=[pl.BlockSpec((1, ick, hw), lambda i: (i, 0, 0))],
            out_specs=pl.BlockSpec((1, total, oc, hw), lambda i: (i, 0, 0, 0))),
        compiler_params=pltpu.CompilerParams(
            dimension_semantics=("parallel",)),
        cost_estimate=cost,
    )(pat)


# ----------------------------------------------------------------------------
# im2col (XLA glue).  Row order c*(kh*kw) + i*kw + j matches
# weight.reshape(OC, C*kh*kw).  Both layouts are major-axis permutes of the
# same tap stack (no lane-crossing transposes).
# ----------------------------------------------------------------------------
def _im2col(x, kh, kw, stride=1, padding=0, dilation=1):
    if padding:
        x = jnp.pad(x, ((0, 0), (0, 0), (padding, padding), (padding, padding)))
    B, C, H, W = x.shape
    Ho = (H - dilation * (kh - 1) - 1) // stride + 1
    Wo = (W - dilation * (kw - 1) - 1) // stride + 1
    taps = []
    for i in range(kh):
        for j in range(kw):
            r0, c0 = i * dilation, j * dilation
            taps.append(x[:, :, r0:r0 + stride * (Ho - 1) + 1:stride,
                                c0:c0 + stride * (Wo - 1) + 1:stride])
    cols = jnp.stack(taps, axis=0)                               # (kh*kw, B, C, Ho, Wo)
    pat = cols.transpose(1, 2, 0, 3, 4).reshape(B, C * kh * kw, Ho * Wo)
    patches_t = cols.transpose(2, 0, 1, 3, 4).reshape(C * kh * kw, B * Ho * Wo)
    return pat, patches_t, Ho, Wo


# ----------------------------------------------------------------------------
# automad.Conv2d.__Func__.forward for a plain-tensor input
# (needs_input_grad = [False, True, True]).
# ----------------------------------------------------------------------------
def automad_conv2d_forward(x, weight, bias, stride=1, padding=0, dilation=1):
    """Returns (grad_placeholder, primal, ret_d) mirroring
    DualTensor(torch.zeros(total_dervs), ret, ret_d)."""
    B = x.shape[0]
    OC, IC, kh, kw = weight.shape
    ICK = IC * kh * kw
    has_bias = bias is not None
    n_dervs_w = OC * ICK
    total_dervs = n_dervs_w + (OC if has_bias else 0)

    pat, patches_t, Ho, Wo = _im2col(x, kh, kw, stride, padding, dilation)

    # primal conv; (OC,B,Ho,Wo)->(B,OC,Ho,Wo) is a cheap major-axis permute.
    out_t = conv_matmul_pallas(patches_t, weight.reshape(OC, ICK), bias)
    ret = out_t.reshape(OC, B, Ho, Wo).transpose(1, 0, 2, 3)

    # derivative tensor, written once directly into its final buffer.
    # (Reference's reshape_biasd swaps H/W in its expand; the bias block is a
    #  constant broadcast, bit-identical for square outputs.)
    ret_d = retd_pallas(pat, OC, with_bias=has_bias)
    ret_d = ret_d.reshape(B * total_dervs, OC, Ho, Wo)

    # TODO(synk): DualTensor subclass / autograd ctx bookkeeping (backward) has
    # no Pallas equivalent; return the (gradient_placeholder, x, xd) triple.
    grad_placeholder = jnp.zeros((total_dervs,), ret.dtype)
    return grad_placeholder, ret, ret_d


if __name__ == "__main__":
    key = jax.random.PRNGKey(0)
    kx, kw_, kb = jax.random.split(key, 3)

    B, IC, OC, H, W, ks = 2, 4, 3, 16, 16, 3
    x = jax.random.normal(kx, (B, IC, H, W), jnp.float32)
    fan_in = IC * ks * ks
    bound = 1.0 / math.sqrt(fan_in)
    weight = jax.random.uniform(kw_, (OC, IC, ks, ks), jnp.float32, -bound, bound)
    bias = jax.random.uniform(kb, (OC,), jnp.float32, -bound, bound)

    fwd = jax.jit(automad_conv2d_forward)
    grad_ph, ret, ret_d = fwd(x, weight, bias)
    jax.block_until_ready((grad_ph, ret, ret_d))

    Ho, Wo = H - ks + 1, W - ks + 1
    n_dervs_w = OC * IC * ks * ks
    total_dervs = n_dervs_w + OC
    assert ret.shape == (B, OC, Ho, Wo)
    assert ret_d.shape == (B * total_dervs, OC, Ho, Wo)
    assert grad_ph.shape == (total_dervs,)

    # primal conv vs XLA f32 reference
    ref = lax.conv_general_dilated(
        x, weight, window_strides=(1, 1), padding="VALID",
        dimension_numbers=("NCHW", "OIHW", "NCHW"),
        precision=lax.Precision.HIGHEST) + bias[None, :, None, None]
    assert jnp.allclose(ret, ref, atol=2e-2, rtol=2e-2), "primal conv mismatch"

    # weight-derivative block vs explicit conv2d(x, seed_cartesian(weight))
    seed_w = jnp.zeros((n_dervs_w * OC * IC * ks * ks,), jnp.float32)
    seed_w = seed_w.at[0::n_dervs_w + 1].set(1.0)
    seed_w = seed_w.reshape(n_dervs_w * OC, IC, ks, ks)
    ref_d_w = lax.conv_general_dilated(
        x, seed_w, window_strides=(1, 1), padding="VALID",
        dimension_numbers=("NCHW", "OIHW", "NCHW"),
        precision=lax.Precision.HIGHEST)
    ref_d_w = ref_d_w.reshape(B, n_dervs_w, OC, Ho, Wo)
    got = ret_d.reshape(B, total_dervs, OC, Ho, Wo)
    assert jnp.allclose(got[:, :n_dervs_w], ref_d_w, atol=1e-5), \
        "weight derivative mismatch"

    # bias-derivative block vs identity broadcast
    ref_d_b = jnp.broadcast_to(
        jnp.eye(OC, dtype=jnp.float32)[None, :, :, None, None],
        (B, OC, OC, Ho, Wo))
    assert jnp.allclose(got[:, n_dervs_w:], ref_d_b), "bias derivative mismatch"

    print("KERNEL_OK")
</pallas_src>

<mosaic_0001>
module attributes {stable_mosaic.version = 11 : i64} {
  func.func @_convmm_kernel(%arg0: i32, %arg1: memref<3x36xf32, #tpu.memory_space<vmem>>, %arg2: memref<3x1xf32, #tpu.memory_space<vmem>>, %arg3: memref<36x128xf32, #tpu.memory_space<vmem>>, %arg4: memref<3x128xf32, #tpu.memory_space<vmem>>) attributes {dimension_semantics = [#tpu.dimension_semantics<parallel>], iteration_bounds = array<i64: 4>, scalar_prefetch = 0 : i64, scratch_operands = 0 : i64, tpu.core_type = #tpu.core_type<tc>, window_params = [{pipeline_mode = #tpu.pipeline_mode<synchronous>, transform_indices = @transform_0, window_bounds = array<i64: 3, 36>}, {pipeline_mode = #tpu.pipeline_mode<synchronous>, transform_indices = @transform_1, window_bounds = array<i64: 3, 1>}, {transform_indices = @transform_2, window_bounds = array<i64: 36, 128>}, {transform_indices = @transform_3, window_bounds = array<i64: 3, 128>}]} {
    %c0 = arith.constant 0 : index
    %c0_0 = arith.constant 0 : index
    %0 = vector.load %arg1[%c0, %c0_0] : memref<3x36xf32, #tpu.memory_space<vmem>>, vector<3x36xf32>
    %c0_1 = arith.constant 0 : index
    %c0_2 = arith.constant 0 : index
    %1 = vector.load %arg3[%c0_1, %c0_2] : memref<36x128xf32, #tpu.memory_space<vmem>>, vector<36x128xf32>
    %cst = arith.constant dense<0.000000e+00> : vector<3x128xf32>
    %2 = tpu.matmul %0, %1, %cst {dimension_numbers = #tpu.dot_dimension_numbers<[1], [0], [0], [1], [0, 0, 1, 1], [], []>} : vector<3x36xf32>, vector<36x128xf32>, vector<3x128xf32> -> vector<3x128xf32>
    %c0_3 = arith.constant 0 : index
    %c0_4 = arith.constant 0 : index
    %3 = vector.load %arg2[%c0_3, %c0_4] : memref<3x1xf32, #tpu.memory_space<vmem>>, vector<3x1xf32>
    %4 = vector.broadcast %3 : vector<3x1xf32> to vector<3x128xf32>
    %5 = arith.addf %2, %4 : vector<3x128xf32>
    %c0_5 = arith.constant 0 : index
    %c0_6 = arith.constant 0 : index
    %6 = vector.load %arg4[%c0_5, %c0_6] : memref<3x128xf32, #tpu.memory_space<vmem>>, vector<3x128xf32>
    tpu.vector_store %arg4[%c0_5, %c0_6], %5 {strides = array<i32>} : memref<3x128xf32, #tpu.memory_space<vmem>>, vector<3x128xf32>,
    return
  }
  func.func @transform_0(%arg0: i32) -> (i32, i32) {
    %c0_i32 = arith.constant 0 : i32
    %c0_i32_0 = arith.constant 0 : i32
    %c0_i32_1 = arith.constant 0 : i32
    return %c0_i32, %c0_i32_0 : i32, i32
  }
  func.func @transform_1(%arg0: i32) -> (i32, i32) {
    %c0_i32 = arith.constant 0 : i32
    %c0_i32_0 = arith.constant 0 : i32
    %c0_i32_1 = arith.constant 0 : i32
    return %c0_i32, %c0_i32_0 : i32, i32
  }
  func.func @transform_2(%arg0: i32) -> (i32, i32) {
    %c0_i32 = arith.constant 0 : i32
    %c0_i32_0 = arith.constant 0 : i32
    return %c0_i32, %arg0 : i32, i32
  }
  func.func @transform_3(%arg0: i32) -> (i32, i32) {
    %c0_i32 = arith.constant 0 : i32
    %c0_i32_0 = arith.constant 0 : i32
    return %c0_i32, %arg0 : i32, i32
  }
}

module attributes {stable_mosaic.version = 11 : i64} {
  func.func @_retd_kernel(%arg0: i32, %arg1: memref<1x36x196xf32, #tpu.memory_space<vmem>>, %arg2: memref<1x111x3x196xf32, #tpu.memory_space<vmem>>) attributes {dimension_semantics = [#tpu.dimension_semantics<parallel>], iteration_bounds = array<i64: 2>, scalar_prefetch = 0 : i64, scratch_operands = 0 : i64, tpu.core_type = #tpu.core_type<tc>, window_params = [{transform_indices = @transform_0, window_bounds = array<i64: 1, 36, 196>}, {transform_indices = @transform_1, window_bounds = array<i64: 1, 111, 3, 196>}]} {
    %0 = tpu.iota {dimensions = array<i32: 0>} : vector<3x3xi32>
    %1 = tpu.iota {dimensions = array<i32: 1>} : vector<3x3xi32>
    %2 = arith.cmpi eq, %0, %1 : vector<3x3xi32>
    %cst = arith.constant 1.000000e+00 : f32
    %cst_0 = arith.constant 0.000000e+00 : f32
    %3 = vector.broadcast %cst : f32 to vector<3x3xf32>
    %4 = vector.broadcast %cst_0 : f32 to vector<3x3xf32>
    %5 = arith.select %2, %3, %4 : vector<3x3xi1>, vector<3x3xf32>
    %c0 = arith.constant 0 : index
    %c0_1 = arith.constant 0 : index
    %c0_2 = arith.constant 0 : index
    %6 = vector.load %arg1[%c0, %c0_1, %c0_2] : memref<1x36x196xf32, #tpu.memory_space<vmem>>, vector<1x36x196xf32>
    %7 = vector.shape_cast %6 : vector<1x36x196xf32> to vector<1x36x1x196xf32>
    %8 = vector.extract_strided_slice %5 {offsets = [0, 0], sizes = [1, 3], strides = [1, 1]} : vector<3x3xf32> to vector<1x3xf32>
    %9 = vector.shape_cast %8 : vector<1x3xf32> to vector<3xf32>
    %10 = vector.shape_cast %9 : vector<3xf32> to vector<1x1x3x1xf32>
    %11 = vector.broadcast %7 : vector<1x36x1x196xf32> to vector<1x36x3x196xf32>
    %12 = vector.broadcast %10 : vector<1x1x3x1xf32> to vector<1x36x3x196xf32>
    %13 = arith.mulf %11, %12 : vector<1x36x3x196xf32>
    %c0_3 = arith.constant 0 : index
    %c0_4 = arith.constant 0 : index
    %c0_5 = arith.constant 0 : index
    %c0_6 = arith.constant 0 : index
    %14 = vector.load %arg2[%c0_3, %c0_4, %c0_5, %c0_6] : memref<1x111x3x196xf32, #tpu.memory_space<vmem>>, vector<1x36x3x196xf32>
    tpu.vector_store %arg2[%c0_3, %c0_4, %c0_5, %c0_6], %13 {strides = array<i32>} : memref<1x111x3x196xf32, #tpu.memory_space<vmem>>, vector<1x36x3x196xf32>,
    %15 = vector.extract_strided_slice %5 {offsets = [1, 0], sizes = [1, 3], strides = [1, 1]} : vector<3x3xf32> to vector<1x3xf32>
    %16 = vector.shape_cast %15 : vector<1x3xf32> to vector<3xf32>
    %17 = vector.shape_cast %16 : vector<3xf32> to vector<1x1x3x1xf32>
    %18 = vector.broadcast %7 : vector<1x36x1x196xf32> to vector<1x36x3x196xf32>
    %19 = vector.broadcast %17 : vector<1x1x3x1xf32> to vector<1x36x3x196xf32>
    %20 = arith.mulf %18, %19 : vector<1x36x3x196xf32>
    %c0_7 = arith.constant 0 : index
    %c36 = arith.constant 36 : index
    %c0_8 = arith.constant 0 : index
    %c0_9 = arith.constant 0 : index
    %21 = vector.load %arg2[%c0_7, %c36, %c0_8, %c0_9] : memref<1x111x3x196xf32, #tpu.memory_space<vmem>>, vector<1x36x3x196xf32>
    tpu.vector_store %arg2[%c0_7, %c36, %c0_8, %c0_9], %20 {strides = array<i32>} : memref<1x111x3x196xf32, #tpu.memory_space<vmem>>, vector<1x36x3x196xf32>,
    %22 = vector.extract_strided_slice %5 {offsets = [2, 0], sizes = [1, 3], strides = [1, 1]} : vector<3x3xf32> to vector<1x3xf32>
    %23 = vector.shape_cast %22 : vector<1x3xf32> to vector<3xf32>
    %24 = vector.shape_cast %23 : vector<3xf32> to vector<1x1x3x1xf32>
    %25 = vector.broadcast %7 : vector<1x36x1x196xf32> to vector<1x36x3x196xf32>
    %26 = vector.broadcast %24 : vector<1x1x3x1xf32> to vector<1x36x3x196xf32>
    %27 = arith.mulf %25, %26 : vector<1x36x3x196xf32>
    %c0_10 = arith.constant 0 : index
    %c72 = arith.constant 72 : index
    %c0_11 = arith.constant 0 : index
    %c0_12 = arith.constant 0 : index
    %28 = vector.load %arg2[%c0_10, %c72, %c0_11, %c0_12] : memref<1x111x3x196xf32, #tpu.memory_space<vmem>>, vector<1x36x3x196xf32>
    tpu.vector_store %arg2[%c0_10, %c72, %c0_11, %c0_12], %27 {strides = array<i32>} : memref<1x111x3x196xf32, #tpu.memory_space<vmem>>, vector<1x36x3x196xf32>,
    %29 = vector.shape_cast %5 : vector<3x3xf32> to vector<1x3x3x1xf32>
    %30 = vector.shape_cast %29 : vector<1x3x3x1xf32> to vector<1x3x3x1xf32>
    %31 = vector.broadcast %30 : vector<1x3x3x1xf32> to vector<1x3x3x196xf32>
    %c0_13 = arith.constant 0 : index
    %c108 = arith.constant 108 : index
    %c0_14 = arith.constant 0 : index
    %c0_15 = arith.constant 0 : index
    %32 = vector.load %arg2[%c0_13, %c108, %c0_14, %c0_15] : memref<1x111x3x196xf32, #tpu.memory_space<vmem>>, vector<1x3x3x196xf32>
    tpu.vector_store %arg2[%c0_13, %c108, %c0_14, %c0_15], %31 {strides = array<i32>} : memref<1x111x3x196xf32, #tpu.memory_space<vmem>>, vector<1x3x3x196xf32>,
    return
  }
  func.func @transform_0(%arg0: i32) -> (i32, i32, i32) {
    %c0_i32 = arith.constant 0 : i32
    %c0_i32_0 = arith.constant 0 : i32
    %c0_i32_1 = arith.constant 0 : i32
    return %arg0, %c0_i32, %c0_i32_0 : i32, i32, i32
  }
  func.func @transform_1(%arg0: i32) -> (i32, i32, i32, i32) {
    %c0_i32 = arith.constant 0 : i32
    %c0_i32_0 = arith.constant 0 : i32
    %c0_i32_1 = arith.constant 0 : i32
    %c0_i32_2 = arith.constant 0 : i32
    return %arg0, %c0_i32, %c0_i32_0, %c0_i32_1 : i32, i32, i32, i32
  }
}

</mosaic_0001>

<llo_original>
// kernel: automad_conv2d_forward.2
$region0: #{automad_conv2d_forward.2}
  #allocation0 [shape = 'u32[]', space=smem, size = 0x4, offset = 0x4, fixed_abs, tag = 'smem constant byte address 0x4 - core index']
  #allocation1 [shape = 'u32[72,128]{1,0:T(1,128)}', space=vmem, size = 0x9000, scoped, tag = 'internal scratch']
  %s0 = inlined_call_operand.vmem [shape: f32[3,36], index: 0, kind: input, shape index: {}]
  %s1 = inlined_call_operand.vmem [shape: f32[3,1], index: 1, kind: input, shape index: {}]
  %s2 = inlined_call_operand.vmem [shape: f32[36,512], index: 2, kind: input, shape index: {}]
  %s3 = inlined_call_operand.vmem [shape: f32[3,512], index: 3, kind: output, shape index: {}]
  %s4 = sld [smem:[#allocation0]]
  $region83: #{automad_conv2d_forward.2} parent=0
    _
  %s6 = ssub.s32 1, %s4
  %s7 = scalar_select 0, %s6, %s4
  $region1: #{automad_conv2d_forward.2} parent=0
    #allocation2 [shape = 'u8[40960]{0}', space=vmem, size = 0xa000, scoped, tag = 'input window, operand 2']
    loop: start=0, step=1, limit=6
    $region2: #{automad_conv2d_forward.2} parent=1 // loop_pre_header
      _
    $region3: #{automad_conv2d_forward.2} parent=1 // loop_header
      %s9 = sphi 0, %s13
      %p10 = scmp.ge.s32.totalorder %s9, 6
      %s17 = sphi 0, %s17
      %s19 = sphi 0, %s17
      %s20 = sphi 0, %s19
      %s34 = sphi 0, %s20
      %s38 = sphi 0, %s38
      %s40 = sphi 0, %s38
      %s41 = sphi 0, %s40
      %s55 = sphi 0, %s41
      %s61 = sphi 0, %s63
      %s64 = sphi 0, %s61
      %s65 = sphi 0, %s64
      %s81 = sphi 0, %s65
      %s87 = sphi 0, %s89
      %s90 = sphi 0, %s87
      %s91 = sphi 0, %s90
      %s107 = sphi 0, %s91
    $region4: #{automad_conv2d_forward.2} parent=1 // loop_header_branch
      %12 = sbr.rel (%p10) target = $region8
    $region5: #{automad_conv2d_forward.2} parent=1 // loop_body
      %s14 = ssub.s32 %s9, 1
      %s15 = ssub.s32 %s9, 2
      %s16 = sadd.s32 %s9, 1
      %s18 = sadd.s32 %s17, 1
      %p21 = scmp.eq.s32.totalorder %s9, 3
      %p22 = scmp.ne.s32.totalorder %s17, %s19
      %p23 = scmp.eq.s32.totalorder %s9, 0
      %p24 = por %p22, %p23
      %p25 = scmp.ne.s32.totalorder %s17, %s19
      %p26 = scmp.eq.s32.totalorder %s14, 3
      %p27 = por %p25, %p26
      %p28 = scmp.ne.s32.totalorder %s19, %s20
      %p29 = scmp.eq.s32.totalorder %s14, 0
      %p30 = por %p28, %p29
      %p31 = scmp.ne.s32.totalorder %s19, %s20
      %p32 = scmp.eq.s32.totalorder %s15, 3
      %p33 = por %p31, %p32
      %p35 = scmp.ne.s32.totalorder %s20, %s34
      %p36 = scmp.eq.s32.totalorder %s15, 0
      %p37 = por %p35, %p36
      %s39 = sadd.s32 %s38, 1
      %p42 = scmp.eq.s32.totalorder %s9, 3
      %p43 = scmp.ne.s32.totalorder %s38, %s40
      %p44 = scmp.eq.s32.totalorder %s9, 0
      %p45 = por %p43, %p44
      %p46 = scmp.ne.s32.totalorder %s38, %s40
      %p47 = scmp.eq.s32.totalorder %s14, 3
      %p48 = por %p46, %p47
      %p49 = scmp.ne.s32.totalorder %s40, %s41
      %p50 = scmp.eq.s32.totalorder %s14, 0
      %p51 = por %p49, %p50
      %p52 = scmp.ne.s32.totalorder %s40, %s41
      %p53 = scmp.eq.s32.totalorder %s15, 3
      %p54 = por %p52, %p53
      %p56 = scmp.ne.s32.totalorder %s41, %s55
      %p57 = scmp.eq.s32.totalorder %s15, 0
      %p58 = por %p56, %p57
      %s59 = ssub.s32 %s9, %s16
      %p60 = scmp.eq.s32.totalorder %s59, 0
      %s62 = sadd.s32 %s61, 1
      %s63 = scalar_select %p60, %s61, %s62
      %p66 = pneg %p60
      %p67 = scmp.eq.s32.totalorder %s9, 3
      %p68 = por %p66, %p67
      %p69 = scmp.ne.s32.totalorder %s61, %s64
      %p70 = scmp.eq.s32.totalorder %s9, 0
      %p71 = por %p69, %p70
      %p72 = scmp.ne.s32.totalorder %s61, %s64
      %p73 = scmp.eq.s32.totalorder %s14, 3
      %p74 = por %p72, %p73
      %p75 = scmp.ne.s32.totalorder %s64, %s65
      %p76 = scmp.eq.s32.totalorder %s14, 0
      %p77 = por %p75, %p76
      %p78 = scmp.ne.s32.totalorder %s64, %s65
      %p79 = scmp.eq.s32.totalorder %s15, 3
      %p80 = por %p78, %p79
      %p82 = scmp.ne.s32.totalorder %s65, %s81
      %p83 = scmp.eq.s32.totalorder %s15, 0
      %p84 = por %p82, %p83
      %s85 = ssub.s32 %s9, %s16
      %p86 = scmp.eq.s32.totalorder %s85, 0
      %s88 = sadd.s32 %s87, 1
      %s89 = scalar_select %p86, %s87, %s88
      %p92 = pneg %p86
      %p93 = scmp.eq.s32.totalorder %s9, 3
      %p94 = por %p92, %p93
      %p95 = scmp.ne.s32.totalorder %s87, %s90
      %p96 = scmp.eq.s32.totalorder %s9, 0
      %p97 = por %p95, %p96
      %p98 = scmp.ne.s32.totalorder %s87, %s90
      %p99 = scmp.eq.s32.totalorder %s14, 3
      %p100 = por %p98, %p99
      %p101 = scmp.ne.s32.totalorder %s90, %s91
      %p102 = scmp.eq.s32.totalorder %s14, 0
      %p103 = por %p101, %p102
      %p104 = scmp.ne.s32.totalorder %s90, %s91
      %p105 = scmp.eq.s32.totalorder %s15, 3
      %p106 = por %p104, %p105
      %p108 = scmp.ne.s32.totalorder %s91, %s107
      %p109 = scmp.eq.s32.totalorder %s15, 0
      %p110 = por %p108, %p109
      %p111 = scmp.le.s32.totalorder 1, %s9
      %p112 = scmp.lt.s32.totalorder %s9, 5
      %p113 = pnand %p111, %p112
      %p114 = pneg %p113
      // Predicated region
      $region9: #{automad_conv2d_forward.2} parent=5 // pred_check
        _
      $region10: #{automad_conv2d_forward.2} parent=5 // pred_check_branch
        %116 = sbr.rel (%p113) target = $region12
      $region11: #{automad_conv2d_forward.2} parent=5 // pred_region
        %s117 = ssub.s32 %s9, 1
        // Predicated region
        $region13: #{automad_conv2d_forward.2} parent=11 // pred_check
          %p118 = pneg %p30
        $region14: #{automad_conv2d_forward.2} parent=11 // pred_check_branch
          %120 = sbr.rel (%p118) target = $region16
        $region15: #{automad_conv2d_forward.2} parent=11 // pred_region
          _
        $region16: #{automad_conv2d_forward.2} parent=11 // pred_fallthru
          _
        // Predicated region
        $region17: #{automad_conv2d_forward.2} parent=11 // pred_check
          %p121 = pneg %p51
        $region18: #{automad_conv2d_forward.2} parent=11 // pred_check_branch
          %123 = sbr.rel (%p121) target = $region20
        $region19: #{automad_conv2d_forward.2} parent=11 // pred_region
          _
        $region20: #{automad_conv2d_forward.2} parent=11 // pred_fallthru
          _
      $region12: #{automad_conv2d_forward.2} parent=5 // pred_fallthru
        _
      %p124 = scmp.lt.s32.totalorder %s9, 4
      // Predicated region
      $region21: #{automad_conv2d_forward.2} parent=5 // pred_check
        %p125 = pneg %p124
      $region22: #{automad_conv2d_forward.2} parent=5 // pred_check_branch
        %127 = sbr.rel (%p125) target = $region24
      $region23: #{automad_conv2d_forward.2} parent=5 // pred_region
        // Predicated region
        $region25: #{automad_conv2d_forward.2} parent=23 // pred_check
          %p128 = pneg %p71
        $region26: #{automad_conv2d_forward.2} parent=23 // pred_check_branch
          %130 = sbr.rel (%p128) target = $region28
        $region27: #{automad_conv2d_forward.2} parent=23 // pred_region
          %s131 = sand.u32 %s61, 1
          %s132 = sand.u32 %s61, 1
          %s133 = smul.addr %s132, 40
          %s134 = scalar_lea.vmem [#allocation2], %s133
          %s135 = smul.addr %s9, 8
          %s136 = scalar_lea.vmem %s2, %s135
          // Predicated region
          $region29: #{automad_conv2d_forward.2} parent=27 // pred_check
            _
          $region30: #{automad_conv2d_forward.2} parent=27 // pred_check_branch
            %138 = sbr.rel (0) target = $region32
          $region31: #{automad_conv2d_forward.2} parent=27 // pred_region
            // Predicated region
            $region33: #{automad_conv2d_forward.2} parent=31 // pred_check
              _
            $region34: #{automad_conv2d_forward.2} parent=31 // pred_check_branch
              %140 = sbr.rel (0) target = $region36
            $region35: #{automad_conv2d_forward.2} parent=31 // pred_region
              // Predicated region
              $region48: #{automad_conv2d_forward.2} parent=35 // pred_check
                _
              $region49: #{automad_conv2d_forward.2} parent=35 // pred_check_branch
                %164 = sbr.rel (0) target = $region51
              $region50: #{automad_conv2d_forward.2} parent=35 // pred_region
                loop: start=0, step=1, limit=1
                $region52: #{automad_conv2d_forward.2} parent=50 // loop_pre_header
                  _
                $region53: #{automad_conv2d_forward.2} parent=50 // loop_header
                  %s166 = sphi 0, %s170
                  %p167 = scmp.ge.s32.totalorder %s166, 1
                  %s171 = sphi %s136, %s136
                  %s172 = sphi %s134, %s134
                $region54: #{automad_conv2d_forward.2} parent=50 // loop_header_branch
                  %169 = sbr.rel (%p167) target = $region58
                $region55: #{automad_conv2d_forward.2} parent=50 // loop_body
                  %v173 = vld [vmem:[%s171] sm:$0xff]
                  %174 = vst [vmem:[%s172] sm:$0xff] %v173
                  %v175 = vld [vmem:[%s171 + $0x20] sm:$0xff]
                  %176 = vst [vmem:[%s172 + $0x8] sm:$0xff] %v175
                  %v177 = vld [vmem:[%s171 + $0x40] sm:$0xff]
                  %178 = vst [vmem:[%s172 + $0x10] sm:$0xff] %v177
                  %v179 = vld [vmem:[%s171 + $0x60] sm:$0xff]
                  %180 = vst [vmem:[%s172 + $0x18] sm:$0xff] %v179
                  %v181 = vld [vmem:[%s171 + $0x80] sm:$0xff]
                  %182 = vst [vmem:[%s172 + $0x20] sm:$0xff] %v181
                $region56: #{automad_conv2d_forward.2} parent=50 // loop_footer
                  %s170 = sadd.s32 1, %s166
                $region57: #{automad_conv2d_forward.2} parent=50 // loop_footer_branch
                  %165 = sbr.rel target = $region53
                $region58: #{automad_conv2d_forward.2} parent=50 // loop_exit
                  _
              $region51: #{automad_conv2d_forward.2} parent=35 // pred_fallthru
                _
              // Predicated region
              $region59: #{automad_conv2d_forward.2} parent=35 // pred_check
                _
              $region60: #{automad_conv2d_forward.2} parent=35 // pred_check_branch
                %184 = sbr.rel target = $region62
              $region61: #{automad_conv2d_forward.2} parent=35 // pred_region
                _
              $region62: #{automad_conv2d_forward.2} parent=35 // pred_fallthru
                _
            $region36: #{automad_conv2d_forward.2} parent=31 // pred_fallthru
              _
            // Predicated region
            $region37: #{automad_conv2d_forward.2} parent=31 // pred_check
              _
            $region38: #{automad_conv2d_forward.2} parent=31 // pred_check_branch
              %142 = sbr.rel target = $region40
            $region39: #{automad_conv2d_forward.2} parent=31 // pred_region
              %s144 = ssub.s32 256, 1
              loop: start=0, step=1, limit=1
              $region41: #{automad_conv2d_forward.2} parent=39 // loop_pre_header
                _
              $region42: #{automad_conv2d_forward.2} parent=39 // loop_header
                %s146 = sphi 0, %s150
                %p147 = scmp.ge.s32.totalorder %s146, 1
                %s151 = sphi %s136, %s136
                %s152 = sphi %s134, %s134
              $region43: #{automad_conv2d_forward.2} parent=39 // loop_header_branch
                %149 = sbr.rel (%p147) target = $region47
              $region44: #{automad_conv2d_forward.2} parent=39 // loop_body
                %v153 = vld [vmem:[%s151] sm:%s144]
                %154 = vst [vmem:[%s152] sm:%s144] %v153
                %v155 = vld [vmem:[%s151 + $0x20] sm:%s144]
                %156 = vst [vmem:[%s152 + $0x8] sm:%s144] %v155
                %v157 = vld [vmem:[%s151 + $0x40] sm:%s144]
                %158 = vst [vmem:[%s152 + $0x10] sm:%s144] %v157
                %v159 = vld [vmem:[%s151 + $0x60] sm:%s144]
                %160 = vst [vmem:[%s152 + $0x18] sm:%s144] %v159
                %v161 = vld [vmem:[%s151 + $0x80] sm:%s144]
                %162 = vst [vmem:[%s152 + $0x20] sm:%s144] %v161
              $region45: #{automad_conv2d_forward.2} parent=39 // loop_footer
                %s150 = sadd.s32 1, %s146
              $region46: #{automad_conv2d_forward.2} parent=39 // loop_footer_branch
                %145 = sbr.rel target = $region42
              $region47: #{automad_conv2d_forward.2} parent=39 // loop_exit
                _
            $region40: #{automad_conv2d_forward.2} parent=31 // pred_fallthru
              _
          $region32: #{automad_conv2d_forward.2} parent=27 // pred_fallthru
            _
          %185 = vnop
        $region28: #{automad_conv2d_forward.2} parent=23 // pred_fallthru
          _
      $region24: #{automad_conv2d_forward.2} parent=5 // pred_fallthru
        _
      %p186 = scmp.le.s32.totalorder 1, %s9
      %p187 = scmp.lt.s32.totalorder %s9, 5
      %p188 = pnand %p186, %p187
      %p189 = pneg %p188
      // Predicated region
      $region63: #{automad_conv2d_forward.2} parent=5 // pred_check
        _
      $region64: #{automad_conv2d_forward.2} parent=5 // pred_check_branch
        %191 = sbr.rel (%p188) target = $region66
      $region65: #{automad_conv2d_forward.2} parent=5 // pred_region
        %s192 = ssub.s32 %s9, 1
        %s193 = sand.u32 %s64, 1
        %s194 = sand.u32 %s64, 1
        %s195 = smul.addr %s194, 40
        %s196 = scalar_lea.vmem [#allocation2], %s195
        // Predicated region
        $region67: #{automad_conv2d_forward.2} parent=65 // pred_check
          %p197 = pneg %p77
        $region68: #{automad_conv2d_forward.2} parent=65 // pred_check_branch
          %199 = sbr.rel (%p197) target = $region70
        $region69: #{automad_conv2d_forward.2} parent=65 // pred_region
          _
        $region70: #{automad_conv2d_forward.2} parent=65 // pred_fallthru
          _
        %p200 = pneg %p30
        %p201 = pneg %p27
        %p202 = pneg %p51
        %p203 = pneg %p48
        %s204 = sand.u32 %s64, 1
        %s205 = sand.u32 %s64, 1
        %s206 = smul.addr %s205, 40
        %s207 = scalar_lea.vmem [#allocation2], %s206
        %p208 = pneg %p77
        %p209 = pneg %p74
        %p210 = pneg %p103
        %p211 = pneg %p100
        %p212 = scmp.lt.s32.totalorder %s14, 3
        %s213 = scalar_select %p212, %s14, 3
        %s214 = smul.addr %s213, 4
        %s215 = scalar_lea.vmem %s3, %s214
        %p216 = scmp.lt.s32.totalorder %s14, 3
        %s217 = scalar_select %p216, %s14, 3
        %s218 = smul.addr %s217, 4
        %s219 = scalar_lea.vmem %s3, %s218
        %v220 = vld [vmem:[%s0] sm:$0x7]
        %v221 = vld [vmem:[%s196] sm:$0xff]
        %v222 = vld [vmem:[%s196 + $0x8] sm:$0xff]
        %v223 = vld [vmem:[%s196 + $0x10] sm:$0xff]
        %v224 = vld [vmem:[%s196 + $0x18] sm:$0xff]
        %v225 = vld [vmem:[%s196 + $0x20] sm:$0xf]
        %v226 = vld [vmem:[%s1] sm:$0x7]
        %228 = vset.pattern.permute.xlu0 0
        %229 = vperm.xlu0 %228, %v226
        %v230 = vpop.permute.xlu0 %229
        %vm232 = vcmask 293888
        %v234 = vsel %vm232, %v220, 0
        %vm236 = vcmask 1043456
        %v238 = vsel %vm236, %v225, 0
        %240 = vmatpush.msra.mxu0 0.0
        %241 = vmatpush.msra.mxu0 0.0
        %242 = vmatpush.msra.mxu0 0.0
        %243 = vmatpush.msra.mxu0 0.0
        %244 = vmatpush.msra.mxu0 0.0
        %245 = vmatpush.msra.mxu0 0.0
        %246 = vmatpush.msra.mxu0 0.0
        %247 = vmatpush.msra.mxu0 0.0
        %248 = vmatpush.msra.mxu0 0.0
        %249 = vmatpush.msra.mxu0 0.0
        %250 = vmatpush.msra.mxu0 0.0
        %251 = vmatpush.msra.mxu0 %v238
        %252 = vmatpush.msra.mxu0 %v224
        %253 = vmatpush.msra.mxu0 %v223
        %254 = vmatpush.msra.mxu0 %v222
        %255 = vmatpush.msra.mxu0 %v221
        %256 = vmatmul.f32.gmra.mxu0 %v234
        %v257 = vpop.f32.mrf.mxu0
        %v258 = vadd.f32 %v230, %v257
        %259 = vdwg.mxu0
        %260 = vst [vmem:[%s219] sm:$0x7] %v258
        %p261 = scmp.lt.s32.totalorder %s14, 3
        %s262 = scalar_select %p261, %s14, 3
        %s263 = smul.addr %s262, 4
        %s264 = scalar_lea.vmem %s3, %s263
        // Predicated region
        $region71: #{automad_conv2d_forward.2} parent=65 // pred_check
          %p265 = pneg %p100
        $region72: #{automad_conv2d_forward.2} parent=65 // pred_check_branch
          %267 = sbr.rel (%p265) target = $region74
        $region73: #{automad_conv2d_forward.2} parent=65 // pred_region
          _
        $region74: #{automad_conv2d_forward.2} parent=65 // pred_fallthru
          _
      $region66: #{automad_conv2d_forward.2} parent=5 // pred_fallthru
        _
      %p268 = scmp.le.s32.totalorder 2, %s9
      // Predicated region
      $region75: #{automad_conv2d_forward.2} parent=5 // pred_check
        %p269 = pneg %p268
      $region76: #{automad_conv2d_forward.2} parent=5 // pred_check_branch
        %271 = sbr.rel (%p269) target = $region78
      $region77: #{automad_conv2d_forward.2} parent=5 // pred_region
        %s272 = ssub.s32 %s9, 2
        // Predicated region
        $region79: #{automad_conv2d_forward.2} parent=77 // pred_check
          %p273 = pneg %p106
        $region80: #{automad_conv2d_forward.2} parent=77 // pred_check_branch
          %275 = sbr.rel (%p273) target = $region82
        $region81: #{automad_conv2d_forward.2} parent=77 // pred_region
          %p276 = scmp.lt.s32.totalorder %s15, 3
          %s277 = scalar_select %p276, %s15, 3
          %s278 = smul.addr %s277, 4
          %s279 = scalar_lea.vmem %s3, %s278
        $region82: #{automad_conv2d_forward.2} parent=77 // pred_fallthru
          _
      $region78: #{automad_conv2d_forward.2} parent=5 // pred_fallthru
        _
    $region6: #{automad_conv2d_forward.2} parent=1 // loop_footer
      %s13 = sadd.s32 1, %s9
    $region7: #{automad_conv2d_forward.2} parent=1 // loop_footer_branch
      %8 = sbr.rel target = $region3
    $region8: #{automad_conv2d_forward.2} parent=1 // loop_exit
      _

// kernel: automad_conv2d_forward.3
$region0: #{automad_conv2d_forward.3}
  #allocation0 [shape = 'u32[]', space=smem, size = 0x4, offset = 0x4, fixed_abs, tag = 'smem constant byte address 0x4 - core index']
  #allocation1 [shape = 'u32[72,128]{1,0:T(1,128)}', space=vmem, size = 0x9000, scoped, tag = 'internal scratch']
  %s0 = inlined_call_operand.vmem [shape: f32[2,36,196], index: 0, kind: input, shape index: {}]
  %s1 = inlined_call_operand.vmem [shape: f32[2,111,3,196], index: 1, kind: output, shape index: {}]
  %s2 = sld [smem:[#allocation0]]
  $region37: #{automad_conv2d_forward.3} parent=0
    _
  %s4 = ssub.s32 1, %s2
  %s5 = scalar_select 0, %s4, %s2
  loop: start=0, step=1, limit=4
  $region2: #{automad_conv2d_forward.3} parent=0 // loop_pre_header
    _
  $region3: #{automad_conv2d_forward.3} parent=0 // loop_header
    %s7 = sphi 0, %s11
    %p8 = scmp.ge.s32.totalorder %s7, 4
    %s17 = sphi 0, %s19
    %s20 = sphi 0, %s17
    %s21 = sphi 0, %s20
    %s37 = sphi 0, %s21
    %s43 = sphi 0, %s45
    %s46 = sphi 0, %s43
    %s47 = sphi 0, %s46
    %s63 = sphi 0, %s47
  $region4: #{automad_conv2d_forward.3} parent=0 // loop_header_branch
    %10 = sbr.rel (%p8) target = $region8
  $region5: #{automad_conv2d_forward.3} parent=0 // loop_body
    %s12 = ssub.s32 %s7, 1
    %s13 = ssub.s32 %s7, 2
    %s14 = sadd.s32 %s7, 1
    %s15 = ssub.s32 %s7, %s14
    %p16 = scmp.eq.s32.totalorder %s15, 0
    %s18 = sadd.s32 %s17, 1
    %s19 = scalar_select %p16, %s17, %s18
    %p22 = pneg %p16
    %p23 = scmp.eq.s32.totalorder %s7, 1
    %p24 = por %p22, %p23
    %p25 = scmp.ne.s32.totalorder %s17, %s20
    %p26 = scmp.eq.s32.totalorder %s7, 0
    %p27 = por %p25, %p26
    %p28 = scmp.ne.s32.totalorder %s17, %s20
    %p29 = scmp.eq.s32.totalorder %s12, 1
    %p30 = por %p28, %p29
    %p31 = scmp.ne.s32.totalorder %s20, %s21
    %p32 = scmp.eq.s32.totalorder %s12, 0
    %p33 = por %p31, %p32
    %p34 = scmp.ne.s32.totalorder %s20, %s21
    %p35 = scmp.eq.s32.totalorder %s13, 1
    %p36 = por %p34, %p35
    %p38 = scmp.ne.s32.totalorder %s21, %s37
    %p39 = scmp.eq.s32.totalorder %s13, 0
    %p40 = por %p38, %p39
    %s41 = ssub.s32 %s7, %s14
    %p42 = scmp.eq.s32.totalorder %s41, 0
    %s44 = sadd.s32 %s43, 1
    %s45 = scalar_select %p42, %s43, %s44
    %p48 = pneg %p42
    %p49 = scmp.eq.s32.totalorder %s7, 1
    %p50 = por %p48, %p49
    %p51 = scmp.ne.s32.totalorder %s43, %s46
    %p52 = scmp.eq.s32.totalorder %s7, 0
    %p53 = por %p51, %p52
    %p54 = scmp.ne.s32.totalorder %s43, %s46
    %p55 = scmp.eq.s32.totalorder %s12, 1
    %p56 = por %p54, %p55
    %p57 = scmp.ne.s32.totalorder %s46, %s47
    %p58 = scmp.eq.s32.totalorder %s12, 0
    %p59 = por %p57, %p58
    %p60 = scmp.ne.s32.totalorder %s46, %s47
    %p61 = scmp.eq.s32.totalorder %s13, 1
    %p62 = por %p60, %p61
    %p64 = scmp.ne.s32.totalorder %s47, %s63
    %p65 = scmp.eq.s32.totalorder %s13, 0
    %p66 = por %p64, %p65
    %p67 = scmp.le.s32.totalorder 1, %s7
    %p68 = scmp.lt.s32.totalorder %s7, 3
    %p69 = pnand %p67, %p68
    %p70 = pneg %p69
    // Predicated region
    $region9: #{automad_conv2d_forward.3} parent=5 // pred_check
      _
    $region10: #{automad_conv2d_forward.3} parent=5 // pred_check_branch
      %72 = sbr.rel (%p69) target = $region12
    $region11: #{automad_conv2d_forward.3} parent=5 // pred_region
      %s73 = ssub.s32 %s7, 1
    $region12: #{automad_conv2d_forward.3} parent=5 // pred_fallthru
      _
    %p74 = scmp.lt.s32.totalorder %s7, 2
    // Predicated region
    $region13: #{automad_conv2d_forward.3} parent=5 // pred_check
      %p75 = pneg %p74
    $region14: #{automad_conv2d_forward.3} parent=5 // pred_check_branch
      %77 = sbr.rel (%p75) target = $region16
    $region15: #{automad_conv2d_forward.3} parent=5 // pred_region
      // Predicated region
      $region17: #{automad_conv2d_forward.3} parent=15 // pred_check
        %p78 = pneg %p27
      $region18: #{automad_conv2d_forward.3} parent=15 // pred_check_branch
        %80 = sbr.rel (%p78) target = $region20
      $region19: #{automad_conv2d_forward.3} parent=15 // pred_region
        %p81 = scmp.lt.s32.totalorder %s7, 1
        %s82 = scalar_select %p81, %s7, 1
        %s83 = smul.addr %s82, 10
        %s84 = smul.addr %s83, 8
        %s85 = scalar_lea.vmem %s0, %s84
      $region20: #{automad_conv2d_forward.3} parent=15 // pred_fallthru
        _
    $region16: #{automad_conv2d_forward.3} parent=5 // pred_fallthru
      _
    %p86 = scmp.le.s32.totalorder 1, %s7
    %p87 = scmp.lt.s32.totalorder %s7, 3
    %p88 = pnand %p86, %p87
    %p89 = pneg %p88
    // Predicated region
    $region21: #{automad_conv2d_forward.3} parent=5 // pred_check
      _
    $region22: #{automad_conv2d_forward.3} parent=5 // pred_check_branch
      %91 = sbr.rel (%p88) target = $region24
    $region23: #{automad_conv2d_forward.3} parent=5 // pred_region
      %s92 = ssub.s32 %s7, 1
      %p93 = scmp.lt.s32.totalorder %s12, 1
      %s94 = scalar_select %p93, %s12, 1
      %s95 = smul.addr %s94, 10
      %s96 = smul.addr %s95, 8
      %s97 = scalar_lea.vmem %s0, %s96
      %p98 = pneg %p33
      %p99 = pneg %p30
      %p100 = pneg %p59
      %p101 = pneg %p56
      %p102 = scmp.lt.s32.totalorder %s12, 1
      %s103 = scalar_select %p102, %s12, 1
      %s104 = smul.addr %s103, 222
      %s105 = smul.addr %s104, 4
      %s106 = scalar_lea.vmem %s1, %s105
      %p107 = scmp.lt.s32.totalorder %s12, 1
      %s108 = scalar_select %p107, %s12, 1
      %s109 = smul.addr %s108, 10
      %s110 = smul.addr %s109, 8
      %s111 = scalar_lea.vmem %s0, %s110
      %p112 = scmp.lt.s32.totalorder %s12, 1
      %s113 = scalar_select %p112, %s12, 1
      %s114 = smul.addr %s113, 222
      %s115 = smul.addr %s114, 4
      %s116 = scalar_lea.vmem %s1, %s115
      %v117 = vlaneseq
      %v118 = vshrl.u32 %v117, 7
      %v119 = vlaneseq
      %v120 = vand.u32 %v119, 127
      %vm121 = vcmp.eq.s32.totalorder %v118, %v120
      %v122 = vsel %vm121, 1.0, 0.0
      %v123 = vld [vmem:[%s111] sm:$0xff]
      %v124 = vld [vmem:[%s111 + $0x8] sm:$0xff]
      %v125 = vld [vmem:[%s111 + $0x10] sm:$0xff]
      %v126 = vld [vmem:[%s111 + $0x18] sm:$0xff]
      %v127 = vld [vmem:[%s111 + $0x20] sm:$0xff]
      %v128 = vld [vmem:[%s111 + $0x28] sm:$0xff]
      %v129 = vld [vmem:[%s111 + $0x30] sm:$0xff]
      %v130 = vld [vmem:[%s111 + $0x38] sm:$0xff]
      %v131 = vld [vmem:[%s111 + $0x40] sm:$0xf]
      %v132 = vld [vmem:[%s111 + $0x48] sm:$0xf]
      %v143 = vrot.slane %v124, 7
      %v144 = vrot.slane %v126, 7
      %v145 = vrot.slane %v128, 7
      %v146 = vrot.slane %v130, 7
      %v147 = vrot.slane %v132, 7
      %vm148 = vcmask 1040384
      %v149 = vsel %vm148, %v123, %v143
      %vm150 = vcmask 1041409
      %v151 = vsel %vm150, %v123, %v143
      %v152 = vrot.slane %v151, 1
      %vm153 = vcmask 1042434
      %v154 = vsel %vm153, %v123, %v143
      %v155 = vrot.slane %v154, 2
      %vm156 = vcmask 1043459
      %v157 = vsel %vm156, %v123, %v143
      %v158 = vrot.slane %v157, 3
      %vm159 = vcmask 1044484
      %v160 = vsel %vm159, %v123, %v143
      %v161 = vrot.slane %v160, 4
      %vm162 = vcmask 1045509
      %v163 = vsel %vm162, %v123, %v143
      %v164 = vrot.slane %v163, 5
      %vm165 = vcmask 1046534
      %v166 = vsel %vm165, %v123, %v143
      %v167 = vrot.slane %v166, 6
      %vm168 = vcmask 1046528
      %v169 = vsel %vm168, %v143, %v123
      %v170 = vrot.slane %v169, 7
      %v171 = vsel %vm148, %v125, %v144
      %v172 = vsel %vm150, %v125, %v144
      %v173 = vrot.slane %v172, 1
      %v174 = vsel %vm153, %v125, %v144
      %v175 = vrot.slane %v174, 2
      %v176 = vsel %vm156, %v125, %v144
      %v177 = vrot.slane %v176, 3
      %v178 = vsel %vm159, %v125, %v144
      %v179 = vrot.slane %v178, 4
      %v180 = vsel %vm162, %v125, %v144
      %v181 = vrot.slane %v180, 5
      %v182 = vsel %vm165, %v125, %v144
      %v183 = vrot.slane %v182, 6
      %v184 = vsel %vm168, %v144, %v125
      %v185 = vrot.slane %v184, 7
      %v186 = vsel %vm148, %v127, %v145
      %v187 = vsel %vm150, %v127, %v145
      %v188 = vrot.slane %v187, 1
      %v189 = vsel %vm153, %v127, %v145
      %v190 = vrot.slane %v189, 2
      %v191 = vsel %vm156, %v127, %v145
      %v192 = vrot.slane %v191, 3
      %v193 = vsel %vm159, %v127, %v145
      %v194 = vrot.slane %v193, 4
      %v195 = vsel %vm162, %v127, %v145
      %v196 = vrot.slane %v195, 5
      %v197 = vsel %vm165, %v127, %v145
      %v198 = vrot.slane %v197, 6
      %v199 = vsel %vm168, %v145, %v127
      %v200 = vrot.slane %v199, 7
      %v201 = vsel %vm148, %v129, %v146
      %v202 = vsel %vm150, %v129, %v146
      %v203 = vrot.slane %v202, 1
      %v204 = vsel %vm153, %v129, %v146
      %v205 = vrot.slane %v204, 2
      %v206 = vsel %vm156, %v129, %v146
      %v207 = vrot.slane %v206, 3
      %v208 = vsel %vm159, %v129, %v146
      %v209 = vrot.slane %v208, 4
      %v210 = vsel %vm162, %v129, %v146
      %v211 = vrot.slane %v210, 5
      %v212 = vsel %vm165, %v129, %v146
      %v213 = vrot.slane %v212, 6
      %v214 = vsel %vm168, %v146, %v129
      %v215 = vrot.slane %v214, 7
      %v216 = vsel %vm148, %v131, %v147
      %v217 = vsel %vm150, %v131, %v147
      %v218 = vrot.slane %v217, 1
      %v219 = vsel %vm153, %v131, %v147
      %v220 = vrot.slane %v219, 2
      %v221 = vsel %vm156, %v131, %v147
      %v222 = vrot.slane %v221, 3
      %v223 = vperm.slane %v122, 0
      %v224 = vlaneseq
      %v225 = vshrl.u32 %v224, 7
      %227 = vset.pattern.permute.xlu0 %v225
      %228 = vperm.xlu0 %227, %v223
      %v229 = vpop.permute.xlu0 %228
      %v230 = vperm.slane %v149, 0
      %v231 = vperm.slane %v149, 1
      %v232 = vperm.slane %v152, 0
      %v233 = vperm.slane %v152, 1
      %v234 = vperm.slane %v155, 0
      %v235 = vperm.slane %v155, 1
      %v236 = vperm.slane %v158, 0
      %v237 = vperm.slane %v158, 1
      %v238 = vperm.slane %v161, 0
      %v239 = vperm.slane %v161, 1
      %v240 = vperm.slane %v164, 0
      %v241 = vperm.slane %v164, 1
      %v242 = vperm.slane %v167, 0
      %v243 = vperm.slane %v167, 1
      %v244 = vperm.slane %v170, 0
      %v245 = vperm.slane %v170, 1
      %v246 = vperm.slane %v171, 0
      %v247 = vperm.slane %v171, 1
      %v248 = vperm.slane %v173, 0
      %v249 = vperm.slane %v173, 1
      %v250 = vperm.slane %v175, 0
      %v251 = vperm.slane %v175, 1
      %v252 = vperm.slane %v177, 0
      %v253 = vperm.slane %v177, 1
      %v254 = vperm.slane %v179, 0
      %v255 = vperm.slane %v179, 1
      %v256 = vperm.slane %v181, 0
      %v257 = vperm.slane %v181, 1
      %v258 = vperm.slane %v183, 0
      %v259 = vperm.slane %v183, 1
      %v260 = vperm.slane %v185, 0
      %v261 = vperm.slane %v185, 1
      %v262 = vperm.slane %v186, 0
      %v263 = vperm.slane %v186, 1
      %v264 = vperm.slane %v188, 0
      %v265 = vperm.slane %v188, 1
      %v266 = vperm.slane %v190, 0
      %v267 = vperm.slane %v190, 1
      %v268 = vperm.slane %v192, 0
      %v269 = vperm.slane %v192, 1
      %v270 = vperm.slane %v194, 0
      %v271 = vperm.slane %v194, 1
      %v272 = vperm.slane %v196, 0
      %v273 = vperm.slane %v196, 1
      %v274 = vperm.slane %v198, 0
      %v275 = vperm.slane %v198, 1
      %v276 = vperm.slane %v200, 0
      %v277 = vperm.slane %v200, 1
      %v278 = vperm.slane %v201, 0
      %v279 = vperm.slane %v201, 1
      %v280 = vperm.slane %v203, 0
      %v281 = vperm.slane %v203, 1
      %v282 = vperm.slane %v205, 0
      %v283 = vperm.slane %v205, 1
      %v284 = vperm.slane %v207, 0
      %v285 = vperm.slane %v207, 1
      %v286 = vperm.slane %v209, 0
      %v287 = vperm.slane %v209, 1
      %v288 = vperm.slane %v211, 0
      %v289 = vperm.slane %v211, 1
      %v290 = vperm.slane %v213, 0
      %v291 = vperm.slane %v213, 1
      %v292 = vperm.slane %v215, 0
      %v293 = vperm.slane %v215, 1
      %v294 = vperm.slane %v216, 0
      %v295 = vperm.slane %v216, 1
      %v296 = vperm.slane %v218, 0
      %v297 = vperm.slane %v218, 1
      %v298 = vperm.slane %v220, 0
      %v299 = vperm.slane %v220, 1
      %v300 = vperm.slane %v222, 0
      %v301 = vperm.slane %v222, 1
      %v374 = vmul.f32 %v230, %v229
      %v375 = vmul.f32 %v231, %v229
      %v376 = vmul.f32 %v232, %v229
      %v377 = vmul.f32 %v233, %v229
      %v378 = vmul.f32 %v234, %v229
      %v379 = vmul.f32 %v235, %v229
      %v380 = vmul.f32 %v236, %v229
      %v381 = vmul.f32 %v237, %v229
      %v382 = vmul.f32 %v238, %v229
      %v383 = vmul.f32 %v239, %v229
      %v384 = vmul.f32 %v240, %v229
      %v385 = vmul.f32 %v241, %v229
      %v386 = vmul.f32 %v242, %v229
      %v387 = vmul.f32 %v243, %v229
      %v388 = vmul.f32 %v244, %v229
      %v389 = vmul.f32 %v245, %v229
      %v390 = vmul.f32 %v246, %v229
      %v391 = vmul.f32 %v247, %v229
      %v392 = vmul.f32 %v248, %v229
      %v393 = vmul.f32 %v249, %v229
      %v394 = vmul.f32 %v250, %v229
      %v395 = vmul.f32 %v251, %v229
      %v396 = vmul.f32 %v252, %v229
      %v397 = vmul.f32 %v253, %v229
      %v398 = vmul.f32 %v254, %v229
      %v399 = vmul.f32 %v255, %v229
      %v400 = vmul.f32 %v256, %v229
      %v401 = vmul.f32 %v257, %v229
      %v402 = vmul.f32 %v258, %v229
      %v403 = vmul.f32 %v259, %v229
      %v404 = vmul.f32 %v260, %v229
      %v405 = vmul.f32 %v261, %v229
      %v406 = vmul.f32 %v262, %v229
      %v407 = vmul.f32 %v263, %v229
      %v408 = vmul.f32 %v264, %v229
      %v409 = vmul.f32 %v265, %v229
      %v410 = vmul.f32 %v266, %v229
      %v411 = vmul.f32 %v267, %v229
      %v412 = vmul.f32 %v268, %v229
      %v413 = vmul.f32 %v269, %v229
      %v414 = vmul.f32 %v270, %v229
      %v415 = vmul.f32 %v271, %v229
      %v416 = vmul.f32 %v272, %v229
      %v417 = vmul.f32 %v273, %v229
      %v418 = vmul.f32 %v274, %v229
      %v419 = vmul.f32 %v275, %v229
      %v420 = vmul.f32 %v276, %v229
      %v421 = vmul.f32 %v277, %v229
      %v422 = vmul.f32 %v278, %v229
      %v423 = vmul.f32 %v279, %v229
      %v424 = vmul.f32 %v280, %v229
      %v425 = vmul.f32 %v281, %v229
      %v426 = vmul.f32 %v282, %v229
      %v427 = vmul.f32 %v283, %v229
      %v428 = vmul.f32 %v284, %v229
      %v429 = vmul.f32 %v285, %v229
      %v430 = vmul.f32 %v286, %v229
      %v431 = vmul.f32 %v287, %v229
      %v432 = vmul.f32 %v288, %v229
      %v433 = vmul.f32 %v289, %v229
      %v434 = vmul.f32 %v290, %v229
      %v435 = vmul.f32 %v291, %v229
      %v436 = vmul.f32 %v292, %v229
      %v437 = vmul.f32 %v293, %v229
      %v438 = vmul.f32 %v294, %v229
      %v439 = vmul.f32 %v295, %v229
      %v440 = vmul.f32 %v296, %v229
      %v441 = vmul.f32 %v297, %v229
      %v442 = vmul.f32 %v298, %v229
      %v443 = vmul.f32 %v299, %v229
      %v444 = vmul.f32 %v300, %v229
      %v445 = vmul.f32 %v301, %v229
      %v518 = vrot.slane %v375, 4
      %v519 = vrot.slane %v377, 4
      %v520 = vrot.slane %v379, 4
      %v521 = vrot.slane %v381, 4
      %v522 = vrot.slane %v383, 4
      %v523 = vrot.slane %v385, 4
      %v524 = vrot.slane %v387, 4
      %v525 = vrot.slane %v389, 4
      %v526 = vrot.slane %v391, 4
      %v527 = vrot.slane %v393, 4
      %v528 = vrot.slane %v395, 4
      %v529 = vrot.slane %v397, 4
      %v530 = vrot.slane %v399, 4
      %v531 = vrot.slane %v401, 4
      %v532 = vrot.slane %v403, 4
      %v533 = vrot.slane %v405, 4
      %v534 = vrot.slane %v407, 4
      %v535 = vrot.slane %v409, 4
      %v536 = vrot.slane %v411, 4
      %v537 = vrot.slane %v413, 4
      %v538 = vrot.slane %v415, 4
      %v539 = vrot.slane %v417, 4
      %v540 = vrot.slane %v419, 4
      %v541 = vrot.slane %v421, 4
      %v542 = vrot.slane %v423, 4
      %v543 = vrot.slane %v425, 4
      %v544 = vrot.slane %v427, 4
      %v545 = vrot.slane %v429, 4
      %v546 = vrot.slane %v431, 4
      %v547 = vrot.slane %v433, 4
      %v548 = vrot.slane %v435, 4
      %v549 = vrot.slane %v437, 4
      %v550 = vrot.slane %v439, 4
      %v551 = vrot.slane %v441, 4
      %v552 = vrot.slane %v443, 4
      %v553 = vrot.slane %v445, 4
      %vm554 = vcmask 1043456
      %v555 = vsel %vm554, %v374, %v518
      %v556 = vsel %vm554, %v376, %v519
      %v557 = vsel %vm554, %v378, %v520
      %v558 = vsel %vm554, %v380, %v521
      %v559 = vsel %vm554, %v382, %v522
      %v560 = vsel %vm554, %v384, %v523
      %v561 = vsel %vm554, %v386, %v524
      %v562 = vsel %vm554, %v388, %v525
      %v563 = vsel %vm554, %v390, %v526
      %v564 = vsel %vm554, %v392, %v527
      %v565 = vsel %vm554, %v394, %v528
      %v566 = vsel %vm554, %v396, %v529
      %v567 = vsel %vm554, %v398, %v530
      %v568 = vsel %vm554, %v400, %v531
      %v569 = vsel %vm554, %v402, %v532
      %v570 = vsel %vm554, %v404, %v533
      %v571 = vsel %vm554, %v406, %v534
      %v572 = vsel %vm554, %v408, %v535
      %v573 = vsel %vm554, %v410, %v536
      %v574 = vsel %vm554, %v412, %v537
      %v575 = vsel %vm554, %v414, %v538
      %v576 = vsel %vm554, %v416, %v539
      %v577 = vsel %vm554, %v418, %v540
      %v578 = vsel %vm554, %v420, %v541
      %v579 = vsel %vm554, %v422, %v542
      %v580 = vsel %vm554, %v424, %v543
      %v581 = vsel %vm554, %v426, %v544
      %v582 = vsel %vm554, %v428, %v545
      %v583 = vsel %vm554, %v430, %v546
      %v584 = vsel %vm554, %v432, %v547
      %v585 = vsel %vm554, %v434, %v548
      %v586 = vsel %vm554, %v436, %v549
      %v587 = vsel %vm554, %v438, %v550
      %v588 = vsel %vm554, %v440, %v551
      %v589 = vsel %vm554, %v442, %v552
      %v590 = vsel %vm554, %v444, %v553
      %vm627 = vcmask 1042432
      %vm628 = vcmask 555012
      %vm629 = vmor %vm628, %vm627
      %630 = vst.msk [vmem:[%s116] sm:$0x77] %vm629, %v555
      %631 = vst.msk [vmem:[%s116 + $0x8] sm:$0x77] %vm629, %v556
      %632 = vst.msk [vmem:[%s116 + $0x10] sm:$0x77] %vm629, %v557
      %633 = vst.msk [vmem:[%s116 + $0x18] sm:$0x77] %vm629, %v558
      %634 = vst.msk [vmem:[%s116 + $0x20] sm:$0x77] %vm629, %v559
      %635 = vst.msk [vmem:[%s116 + $0x28] sm:$0x77] %vm629, %v560
      %636 = vst.msk [vmem:[%s116 + $0x30] sm:$0x77] %vm629, %v561
      %637 = vst.msk [vmem:[%s116 + $0x38] sm:$0x77] %vm629, %v562
      %638 = vst.msk [vmem:[%s116 + $0x40] sm:$0x77] %vm629, %v563
      %639 = vst.msk [vmem:[%s116 + $0x48] sm:$0x77] %vm629, %v564
      %640 = vst.msk [vmem:[%s116 + $0x50] sm:$0x77] %vm629, %v565
      %641 = vst.msk [vmem:[%s116 + $0x58] sm:$0x77] %vm629, %v566
      %642 = vst.msk [vmem:[%s116 + $0x60] sm:$0x77] %vm629, %v567
      %643 = vst.msk [vmem:[%s116 + $0x68] sm:$0x77] %vm629, %v568
      %644 = vst.msk [vmem:[%s116 + $0x70] sm:$0x77] %vm629, %v569
      %645 = vst.msk [vmem:[%s116 + $0x78] sm:$0x77] %vm629, %v570
      %646 = vst.msk [vmem:[%s116 + $0x80] sm:$0x77] %vm629, %v571
      %647 = vst.msk [vmem:[%s116 + $0x88] sm:$0x77] %vm629, %v572
      %648 = vst.msk [vmem:[%s116 + $0x90] sm:$0x77] %vm629, %v573
      %649 = vst.msk [vmem:[%s116 + $0x98] sm:$0x77] %vm629, %v574
      %650 = vst.msk [vmem:[%s116 + $0xa0] sm:$0x77] %vm629, %v575
      %651 = vst.msk [vmem:[%s116 + $0xa8] sm:$0x77] %vm629, %v576
      %652 = vst.msk [vmem:[%s116 + $0xb0] sm:$0x77] %vm629, %v577
      %653 = vst.msk [vmem:[%s116 + $0xb8] sm:$0x77] %vm629, %v578
      %654 = vst.msk [vmem:[%s116 + $0xc0] sm:$0x77] %vm629, %v579
      %655 = vst.msk [vmem:[%s116 + $0xc8] sm:$0x77] %vm629, %v580
      %656 = vst.msk [vmem:[%s116 + $0xd0] sm:$0x77] %vm629, %v581
      %657 = vst.msk [vmem:[%s116 + $0xd8] sm:$0x77] %vm629, %v582
      %658 = vst.msk [vmem:[%s116 + $0xe0] sm:$0x77] %vm629, %v583
      %659 = vst.msk [vmem:[%s116 + $0xe8] sm:$0x77] %vm629, %v584
      %660 = vst.msk [vmem:[%s116 + $0xf0] sm:$0x77] %vm629, %v585
      %661 = vst.msk [vmem:[%s116 + $0xf8] sm:$0x77] %vm629, %v586
      %662 = vst.msk [vmem:[%s116 + $0x100] sm:$0x77] %vm629, %v587
      %663 = vst.msk [vmem:[%s116 + $0x108] sm:$0x77] %vm629, %v588
      %664 = vst.msk [vmem:[%s116 + $0x110] sm:$0x77] %vm629, %v589
      %665 = vst.msk [vmem:[%s116 + $0x118] sm:$0x77] %vm629, %v590
      %v666 = vperm.slane %v122, 1
      %v667 = vlaneseq
      %v668 = vshrl.u32 %v667, 7
      %670 = vset.pattern.permute.xlu0 %v668
      %671 = vperm.xlu0 %670, %v666
      %v672 = vpop.permute.xlu0 %671
      %v673 = vmul.f32 %v230, %v672
      %v674 = vmul.f32 %v231, %v672
      %v675 = vmul.f32 %v232, %v672
      %v676 = vmul.f32 %v233, %v672
      %v677 = vmul.f32 %v234, %v672
      %v678 = vmul.f32 %v235, %v672
      %v679 = vmul.f32 %v236, %v672
      %v680 = vmul.f32 %v237, %v672
      %v681 = vmul.f32 %v238, %v672
      %v682 = vmul.f32 %v239, %v672
      %v683 = vmul.f32 %v240, %v672
      %v684 = vmul.f32 %v241, %v672
      %v685 = vmul.f32 %v242, %v672
      %v686 = vmul.f32 %v243, %v672
      %v687 = vmul.f32 %v244, %v672
      %v688 = vmul.f32 %v245, %v672
      %v689 = vmul.f32 %v246, %v672
      %v690 = vmul.f32 %v247, %v672
      %v691 = vmul.f32 %v248, %v672
      %v692 = vmul.f32 %v249, %v672
      %v693 = vmul.f32 %v250, %v672
      %v694 = vmul.f32 %v251, %v672
      %v695 = vmul.f32 %v252, %v672
      %v696 = vmul.f32 %v253, %v672
      %v697 = vmul.f32 %v254, %v672
      %v698 = vmul.f32 %v255, %v672
      %v699 = vmul.f32 %v256, %v672
      %v700 = vmul.f32 %v257, %v672
      %v701 = vmul.f32 %v258, %v672
      %v702 = vmul.f32 %v259, %v672
      %v703 = vmul.f32 %v260, %v672
      %v704 = vmul.f32 %v261, %v672
      %v705 = vmul.f32 %v262, %v672
      %v706 = vmul.f32 %v263, %v672
      %v707 = vmul.f32 %v264, %v672
      %v708 = vmul.f32 %v265, %v672
      %v709 = vmul.f32 %v266, %v672
      %v710 = vmul.f32 %v267, %v672
      %v711 = vmul.f32 %v268, %v672
      %v712 = vmul.f32 %v269, %v672
      %v713 = vmul.f32 %v270, %v672
      %v714 = vmul.f32 %v271, %v672
      %v715 = vmul.f32 %v272, %v672
      %v716 = vmul.f32 %v273, %v672
      %v717 = vmul.f32 %v274, %v672
      %v718 = vmul.f32 %v275, %v672
      %v719 = vmul.f32 %v276, %v672
      %v720 = vmul.f32 %v277, %v672
      %v721 = vmul.f32 %v278, %v672
      %v722 = vmul.f32 %v279, %v672
      %v723 = vmul.f32 %v280, %v672
      %v724 = vmul.f32 %v281, %v672
      %v725 = vmul.f32 %v282, %v672
      %v726 = vmul.f32 %v283, %v672
      %v727 = vmul.f32 %v284, %v672
      %v728 = vmul.f32 %v285, %v672
      %v729 = vmul.f32 %v286, %v672
      %v730 = vmul.f32 %v287, %v672
      %v731 = vmul.f32 %v288, %v672
      %v732 = vmul.f32 %v289, %v672
      %v733 = vmul.f32 %v290, %v672
      %v734 = vmul.f32 %v291, %v672
      %v735 = vmul.f32 %v292, %v672
      %v736 = vmul.f32 %v293, %v672
      %v737 = vmul.f32 %v294, %v672
      %v738 = vmul.f32 %v295, %v672
      %v739 = vmul.f32 %v296, %v672
      %v740 = vmul.f32 %v297, %v672
      %v741 = vmul.f32 %v298, %v672
      %v742 = vmul.f32 %v299, %v672
      %v743 = vmul.f32 %v300, %v672
      %v744 = vmul.f32 %v301, %v672
      %v817 = vrot.slane %v674, 4
      %v818 = vrot.slane %v676, 4
      %v819 = vrot.slane %v678, 4
      %v820 = vrot.slane %v680, 4
      %v821 = vrot.slane %v682, 4
      %v822 = vrot.slane %v684, 4
      %v823 = vrot.slane %v686, 4
      %v824 = vrot.slane %v688, 4
      %v825 = vrot.slane %v690, 4
      %v826 = vrot.slane %v692, 4
      %v827 = vrot.slane %v694, 4
      %v828 = vrot.slane %v696, 4
      %v829 = vrot.slane %v698, 4
      %v830 = vrot.slane %v700, 4
      %v831 = vrot.slane %v702, 4
      %v832 = vrot.slane %v704, 4
      %v833 = vrot.slane %v706, 4
      %v834 = vrot.slane %v708, 4
      %v835 = vrot.slane %v710, 4
      %v836 = vrot.slane %v712, 4
      %v837 = vrot.slane %v714, 4
      %v838 = vrot.slane %v716, 4
      %v839 = vrot.slane %v718, 4
      %v840 = vrot.slane %v720, 4
      %v841 = vrot.slane %v722, 4
      %v842 = vrot.slane %v724, 4
      %v843 = vrot.slane %v726, 4
      %v844 = vrot.slane %v728, 4
      %v845 = vrot.slane %v730, 4
      %v846 = vrot.slane %v732, 4
      %v847 = vrot.slane %v734, 4
      %v848 = vrot.slane %v736, 4
      %v849 = vrot.slane %v738, 4
      %v850 = vrot.slane %v740, 4
      %v851 = vrot.slane %v742, 4
      %v852 = vrot.slane %v744, 4
      %v853 = vsel %vm554, %v673, %v817
      %v854 = vsel %vm554, %v675, %v818
      %v855 = vsel %vm554, %v677, %v819
      %v856 = vsel %vm554, %v679, %v820
      %v857 = vsel %vm554, %v681, %v821
      %v858 = vsel %vm554, %v683, %v822
      %v859 = vsel %vm554, %v685, %v823
      %v860 = vsel %vm554, %v687, %v824
      %v861 = vsel %vm554, %v689, %v825
      %v862 = vsel %vm554, %v691, %v826
      %v863 = vsel %vm554, %v693, %v827
      %v864 = vsel %vm554, %v695, %v828
      %v865 = vsel %vm554, %v697, %v829
      %v866 = vsel %vm554, %v699, %v830
      %v867 = vsel %vm554, %v701, %v831
      %v868 = vsel %vm554, %v703, %v832
      %v869 = vsel %vm554, %v705, %v833
      %v870 = vsel %vm554, %v707, %v834
      %v871 = vsel %vm554, %v709, %v835
      %v872 = vsel %vm554, %v711, %v836
      %v873 = vsel %vm554, %v713, %v837
      %v874 = vsel %vm554, %v715, %v838
      %v875 = vsel %vm554, %v717, %v839
      %v876 = vsel %vm554, %v719, %v840
      %v877 = vsel %vm554, %v721, %v841
      %v878 = vsel %vm554, %v723, %v842
      %v879 = vsel %vm554, %v725, %v843
      %v880 = vsel %vm554, %v727, %v844
      %v881 = vsel %vm554, %v729, %v845
      %v882 = vsel %vm554, %v731, %v846
      %v883 = vsel %vm554, %v733, %v847
      %v884 = vsel %vm554, %v735, %v848
      %v885 = vsel %vm554, %v737, %v849
      %v886 = vsel %vm554, %v739, %v850
      %v887 = vsel %vm554, %v741, %v851
      %v888 = vsel %vm554, %v743, %v852
      %s925 = scalar_lea.vmem %s116, 288
      %926 = vst.msk [vmem:[%s925] sm:$0x77] %vm629, %v853
      %927 = vst.msk [vmem:[%s925 + $0x8] sm:$0x77] %vm629, %v854
      %928 = vst.msk [vmem:[%s925 + $0x10] sm:$0x77] %vm629, %v855
      %929 = vst.msk [vmem:[%s925 + $0x18] sm:$0x77] %vm629, %v856
      %930 = vst.msk [vmem:[%s925 + $0x20] sm:$0x77] %vm629, %v857
      %931 = vst.msk [vmem:[%s925 + $0x28] sm:$0x77] %vm629, %v858
      %932 = vst.msk [vmem:[%s925 + $0x30] sm:$0x77] %vm629, %v859
      %933 = vst.msk [vmem:[%s925 + $0x38] sm:$0x77] %vm629, %v860
      %934 = vst.msk [vmem:[%s925 + $0x40] sm:$0x77] %vm629, %v861
      %935 = vst.msk [vmem:[%s925 + $0x48] sm:$0x77] %vm629, %v862
      %936 = vst.msk [vmem:[%s925 + $0x50] sm:$0x77] %vm629, %v863
      %937 = vst.msk [vmem:[%s925 + $0x58] sm:$0x77] %vm629, %v864
      %938 = vst.msk [vmem:[%s925 + $0x60] sm:$0x77] %vm629, %v865
      %939 = vst.msk [vmem:[%s925 + $0x68] sm:$0x77] %vm629, %v866
      %940 = vst.msk [vmem:[%s925 + $0x70] sm:$0x77] %vm629, %v867
      %941 = vst.msk [vmem:[%s925 + $0x78] sm:$0x77] %vm629, %v868
      %942 = vst.msk [vmem:[%s925 + $0x80] sm:$0x77] %vm629, %v869
      %943 = vst.msk [vmem:[%s925 + $0x88] sm:$0x77] %vm629, %v870
      %944 = vst.msk [vmem:[%s925 + $0x90] sm:$0x77] %vm629, %v871
      %945 = vst.msk [vmem:[%s925 + $0x98] sm:$0x77] %vm629, %v872
      %946 = vst.msk [vmem:[%s925 + $0xa0] sm:$0x77] %vm629, %v873
      %947 = vst.msk [vmem:[%s925 + $0xa8] sm:$0x77] %vm629, %v874
      %948 = vst.msk [vmem:[%s925 + $0xb0] sm:$0x77] %vm629, %v875
      %949 = vst.msk [vmem:[%s925 + $0xb8] sm:$0x77] %vm629, %v876
      %950 = vst.msk [vmem:[%s925 + $0xc0] sm:$0x77] %vm629, %v877
      %951 = vst.msk [vmem:[%s925 + $0xc8] sm:$0x77] %vm629, %v878
      %952 = vst.msk [vmem:[%s925 + $0xd0] sm:$0x77] %vm629, %v879
      %953 = vst.msk [vmem:[%s925 + $0xd8] sm:$0x77] %vm629, %v880
      %954 = vst.msk [vmem:[%s925 + $0xe0] sm:$0x77] %vm629, %v881
      %955 = vst.msk [vmem:[%s925 + $0xe8] sm:$0x77] %vm629, %v882
      %956 = vst.msk [vmem:[%s925 + $0xf0] sm:$0x77] %vm629, %v883
      %957 = vst.msk [vmem:[%s925 + $0xf8] sm:$0x77] %vm629, %v884
      %958 = vst.msk [vmem:[%s925 + $0x100] sm:$0x77] %vm629, %v885
      %959 = vst.msk [vmem:[%s925 + $0x108] sm:$0x77] %vm629, %v886
      %960 = vst.msk [vmem:[%s925 + $0x110] sm:$0x77] %vm629, %v887
      %961 = vst.msk [vmem:[%s925 + $0x118] sm:$0x77] %vm629, %v888
      %v962 = vperm.slane %v122, 2
      %v963 = vlaneseq
      %v964 = vshrl.u32 %v963, 7
      %966 = vset.pattern.permute.xlu0 %v964
      %967 = vperm.xlu0 %966, %v962
      %v968 = vpop.permute.xlu0 %967
      %v969 = vmul.f32 %v230, %v968
      %v970 = vmul.f32 %v231, %v968
      %v971 = vmul.f32 %v232, %v968
      %v972 = vmul.f32 %v233, %v968
      %v973 = vmul.f32 %v234, %v968
      %v974 = vmul.f32 %v235, %v968
      %v975 = vmul.f32 %v236, %v968
      %v976 = vmul.f32 %v237, %v968
      %v977 = vmul.f32 %v238, %v968
      %v978 = vmul.f32 %v239, %v968
      %v979 = vmul.f32 %v240, %v968
      %v980 = vmul.f32 %v241, %v968
      %v981 = vmul.f32 %v242, %v968
      %v982 = vmul.f32 %v243, %v968
      %v983 = vmul.f32 %v244, %v968
      %v984 = vmul.f32 %v245, %v968
      %v985 = vmul.f32 %v246, %v968
      %v986 = vmul.f32 %v247, %v968
      %v987 = vmul.f32 %v248, %v968
      %v988 = vmul.f32 %v249, %v968
      %v989 = vmul.f32 %v250, %v968
      %v990 = vmul.f32 %v251, %v968
      %v991 = vmul.f32 %v252, %v968
      %v992 = vmul.f32 %v253, %v968
      %v993 = vmul.f32 %v254, %v968
      %v994 = vmul.f32 %v255, %v968
      %v995 = vmul.f32 %v256, %v968
      %v996 = vmul.f32 %v257, %v968
      %v997 = vmul.f32 %v258, %v968
      %v998 = vmul.f32 %v259, %v968
      %v999 = vmul.f32 %v260, %v968
      %v1000 = vmul.f32 %v261, %v968
      %v1001 = vmul.f32 %v262, %v968
      %v1002 = vmul.f32 %v263, %v968
      %v1003 = vmul.f32 %v264, %v968
      %v1004 = vmul.f32 %v265, %v968
      %v1005 = vmul.f32 %v266, %v968
      %v1006 = vmul.f32 %v267, %v968
      %v1007 = vmul.f32 %v268, %v968
      %v1008 = vmul.f32 %v269, %v968
      %v1009 = vmul.f32 %v270, %v968
      %v1010 = vmul.f32 %v271, %v968
      %v1011 = vmul.f32 %v272, %v968
      %v1012 = vmul.f32 %v273, %v968
      %v1013 = vmul.f32 %v274, %v968
      %v1014 = vmul.f32 %v275, %v968
      %v1015 = vmul.f32 %v276, %v968
      %v1016 = vmul.f32 %v277, %v968
      %v1017 = vmul.f32 %v278, %v968
      %v1018 = vmul.f32 %v279, %v968
      %v1019 = vmul.f32 %v280, %v968
      %v1020 = vmul.f32 %v281, %v968
      %v1021 = vmul.f32 %v282, %v968
      %v1022 = vmul.f32 %v283, %v968
      %v1023 = vmul.f32 %v284, %v968
      %v1024 = vmul.f32 %v285, %v968
      %v1025 = vmul.f32 %v286, %v968
      %v1026 = vmul.f32 %v287, %v968
      %v1027 = vmul.f32 %v288, %v968
      %v1028 = vmul.f32 %v289, %v968
      %v1029 = vmul.f32 %v290, %v968
      %v1030 = vmul.f32 %v291, %v968
      %v1031 = vmul.f32 %v292, %v968
      %v1032 = vmul.f32 %v293, %v968
      %v1033 = vmul.f32 %v294, %v968
      %v1034 = vmul.f32 %v295, %v968
      %v1035 = vmul.f32 %v296, %v968
      %v1036 = vmul.f32 %v297, %v968
      %v1037 = vmul.f32 %v298, %v968
      %v1038 = vmul.f32 %v299, %v968
      %v1039 = vmul.f32 %v300, %v968
      %v1040 = vmul.f32 %v301, %v968
      %v1113 = vrot.slane %v970, 4
      %v1114 = vrot.slane %v972, 4
      %v1115 = vrot.slane %v974, 4
      %v1116 = vrot.slane %v976, 4
      %v1117 = vrot.slane %v978, 4
      %v1118 = vrot.slane %v980, 4
      %v1119 = vrot.slane %v982, 4
      %v1120 = vrot.slane %v984, 4
      %v1121 = vrot.slane %v986, 4
      %v1122 = vrot.slane %v988, 4
      %v1123 = vrot.slane %v990, 4
      %v1124 = vrot.slane %v992, 4
      %v1125 = vrot.slane %v994, 4
      %v1126 = vrot.slane %v996, 4
      %v1127 = vrot.slane %v998, 4
      %v1128 = vrot.slane %v1000, 4
      %v1129 = vrot.slane %v1002, 4
      %v1130 = vrot.slane %v1004, 4
      %v1131 = vrot.slane %v1006, 4
      %v1132 = vrot.slane %v1008, 4
      %v1133 = vrot.slane %v1010, 4
      %v1134 = vrot.slane %v1012, 4
      %v1135 = vrot.slane %v1014, 4
      %v1136 = vrot.slane %v1016, 4
      %v1137 = vrot.slane %v1018, 4
      %v1138 = vrot.slane %v1020, 4
      %v1139 = vrot.slane %v1022, 4
      %v1140 = vrot.slane %v1024, 4
      %v1141 = vrot.slane %v1026, 4
      %v1142 = vrot.slane %v1028, 4
      %v1143 = vrot.slane %v1030, 4
      %v1144 = vrot.slane %v1032, 4
      %v1145 = vrot.slane %v1034, 4
      %v1146 = vrot.slane %v1036, 4
      %v1147 = vrot.slane %v1038, 4
      %v1148 = vrot.slane %v1040, 4
      %v1149 = vsel %vm554, %v969, %v1113
      %v1150 = vsel %vm554, %v971, %v1114
      %v1151 = vsel %vm554, %v973, %v1115
      %v1152 = vsel %vm554, %v975, %v1116
      %v1153 = vsel %vm554, %v977, %v1117
      %v1154 = vsel %vm554, %v979, %v1118
      %v1155 = vsel %vm554, %v981, %v1119
      %v1156 = vsel %vm554, %v983, %v1120
      %v1157 = vsel %vm554, %v985, %v1121
      %v1158 = vsel %vm554, %v987, %v1122
      %v1159 = vsel %vm554, %v989, %v1123
      %v1160 = vsel %vm554, %v991, %v1124
      %v1161 = vsel %vm554, %v993, %v1125
      %v1162 = vsel %vm554, %v995, %v1126
      %v1163 = vsel %vm554, %v997, %v1127
      %v1164 = vsel %vm554, %v999, %v1128
      %v1165 = vsel %vm554, %v1001, %v1129
      %v1166 = vsel %vm554, %v1003, %v1130
      %v1167 = vsel %vm554, %v1005, %v1131
      %v1168 = vsel %vm554, %v1007, %v1132
      %v1169 = vsel %vm554, %v1009, %v1133
      %v1170 = vsel %vm554, %v1011, %v1134
      %v1171 = vsel %vm554, %v1013, %v1135
      %v1172 = vsel %vm554, %v1015, %v1136
      %v1173 = vsel %vm554, %v1017, %v1137
      %v1174 = vsel %vm554, %v1019, %v1138
      %v1175 = vsel %vm554, %v1021, %v1139
      %v1176 = vsel %vm554, %v1023, %v1140
      %v1177 = vsel %vm554, %v1025, %v1141
      %v1178 = vsel %vm554, %v1027, %v1142
      %v1179 = vsel %vm554, %v1029, %v1143
      %v1180 = vsel %vm554, %v1031, %v1144
      %v1181 = vsel %vm554, %v1033, %v1145
      %v1182 = vsel %vm554, %v1035, %v1146
      %v1183 = vsel %vm554, %v1037, %v1147
      %v1184 = vsel %vm554, %v1039, %v1148
      %s1221 = scalar_lea.vmem %s116, 576
      %1222 = vst.msk [vmem:[%s1221] sm:$0x77] %vm629, %v1149
      %1223 = vst.msk [vmem:[%s1221 + $0x8] sm:$0x77] %vm629, %v1150
      %1224 = vst.msk [vmem:[%s1221 + $0x10] sm:$0x77] %vm629, %v1151
      %1225 = vst.msk [vmem:[%s1221 + $0x18] sm:$0x77] %vm629, %v1152
      %1226 = vst.msk [vmem:[%s1221 + $0x20] sm:$0x77] %vm629, %v1153
      %1227 = vst.msk [vmem:[%s1221 + $0x28] sm:$0x77] %vm629, %v1154
      %1228 = vst.msk [vmem:[%s1221 + $0x30] sm:$0x77] %vm629, %v1155
      %1229 = vst.msk [vmem:[%s1221 + $0x38] sm:$0x77] %vm629, %v1156
      %1230 = vst.msk [vmem:[%s1221 + $0x40] sm:$0x77] %vm629, %v1157
      %1231 = vst.msk [vmem:[%s1221 + $0x48] sm:$0x77] %vm629, %v1158
      %1232 = vst.msk [vmem:[%s1221 + $0x50] sm:$0x77] %vm629, %v1159
      %1233 = vst.msk [vmem:[%s1221 + $0x58] sm:$0x77] %vm629, %v1160
      %1234 = vst.msk [vmem:[%s1221 + $0x60] sm:$0x77] %vm629, %v1161
      %1235 = vst.msk [vmem:[%s1221 + $0x68] sm:$0x77] %vm629, %v1162
      %1236 = vst.msk [vmem:[%s1221 + $0x70] sm:$0x77] %vm629, %v1163
      %1237 = vst.msk [vmem:[%s1221 + $0x78] sm:$0x77] %vm629, %v1164
      %1238 = vst.msk [vmem:[%s1221 + $0x80] sm:$0x77] %vm629, %v1165
      %1239 = vst.msk [vmem:[%s1221 + $0x88] sm:$0x77] %vm629, %v1166
      %1240 = vst.msk [vmem:[%s1221 + $0x90] sm:$0x77] %vm629, %v1167
      %1241 = vst.msk [vmem:[%s1221 + $0x98] sm:$0x77] %vm629, %v1168
      %1242 = vst.msk [vmem:[%s1221 + $0xa0] sm:$0x77] %vm629, %v1169
      %1243 = vst.msk [vmem:[%s1221 + $0xa8] sm:$0x77] %vm629, %v1170
      %1244 = vst.msk [vmem:[%s1221 + $0xb0] sm:$0x77] %vm629, %v1171
      %1245 = vst.msk [vmem:[%s1221 + $0xb8] sm:$0x77] %vm629, %v1172
      %1246 = vst.msk [vmem:[%s1221 + $0xc0] sm:$0x77] %vm629, %v1173
      %1247 = vst.msk [vmem:[%s1221 + $0xc8] sm:$0x77] %vm629, %v1174
      %1248 = vst.msk [vmem:[%s1221 + $0xd0] sm:$0x77] %vm629, %v1175
      %1249 = vst.msk [vmem:[%s1221 + $0xd8] sm:$0x77] %vm629, %v1176
      %1250 = vst.msk [vmem:[%s1221 + $0xe0] sm:$0x77] %vm629, %v1177
      %1251 = vst.msk [vmem:[%s1221 + $0xe8] sm:$0x77] %vm629, %v1178
      %1252 = vst.msk [vmem:[%s1221 + $0xf0] sm:$0x77] %vm629, %v1179
      %1253 = vst.msk [vmem:[%s1221 + $0xf8] sm:$0x77] %vm629, %v1180
      %1254 = vst.msk [vmem:[%s1221 + $0x100] sm:$0x77] %vm629, %v1181
      %1255 = vst.msk [vmem:[%s1221 + $0x108] sm:$0x77] %vm629, %v1182
      %1256 = vst.msk [vmem:[%s1221 + $0x110] sm:$0x77] %vm629, %v1183
      %1257 = vst.msk [vmem:[%s1221 + $0x118] sm:$0x77] %vm629, %v1184
      %v1262 = vunpack.c.l.s4 839922192
      %v1263 = vunpack.c.0.s8 %v1262
      %v1264 = vperm.slane %v229, %v1263
      %v1266 = vunpack.c.l.s4 839922192
      %v1267 = vunpack.c.0.s8 %v1266
      %v1268 = vperm.slane %v672, %v1267
      %v1270 = vunpack.c.l.s4 839922192
      %v1271 = vunpack.c.0.s8 %v1270
      %v1272 = vperm.slane %v968, %v1271
      %s1276 = scalar_lea.vmem %s116, 864
      %1277 = vst.msk [vmem:[%s1276] sm:$0x77] %vm629, %v1264
      %1278 = vst.msk [vmem:[%s1276 + $0x8] sm:$0x77] %vm629, %v1268
      %1279 = vst.msk [vmem:[%s1276 + $0x10] sm:$0x77] %vm629, %v1272
      %p1280 = scmp.lt.s32.totalorder %s12, 1
      %s1281 = scalar_select %p1280, %s12, 1
      %s1282 = smul.addr %s1281, 222
      %s1283 = smul.addr %s1282, 4
      %s1284 = scalar_lea.vmem %s1, %s1283
      // Predicated region
      $region25: #{automad_conv2d_forward.3} parent=23 // pred_check
        %p1285 = pneg %p56
      $region26: #{automad_conv2d_forward.3} parent=23 // pred_check_branch
        %1287 = sbr.rel (%p1285) target = $region28
      $region27: #{automad_conv2d_forward.3} parent=23 // pred_region
        _
      $region28: #{automad_conv2d_forward.3} parent=23 // pred_fallthru
        _
    $region24: #{automad_conv2d_forward.3} parent=5 // pred_fallthru
      _
    %p1288 = scmp.le.s32.totalorder 2, %s7
    // Predicated region
    $region29: #{automad_conv2d_forward.3} parent=5 // pred_check
      %p1289 = pneg %p1288
    $region30: #{automad_conv2d_forward.3} parent=5 // pred_check_branch
      %1291 = sbr.rel (%p1289) target = $region32
    $region31: #{automad_conv2d_forward.3} parent=5 // pred_region
      %s1292 = ssub.s32 %s7, 2
      // Predicated region
      $region33: #{automad_conv2d_forward.3} parent=31 // pred_check
        %p1293 = pneg %p62
      $region34: #{automad_conv2d_forward.3} parent=31 // pred_check_branch
        %1295 = sbr.rel (%p1293) target = $region36
      $region35: #{automad_conv2d_forward.3} parent=31 // pred_region
        %p1296 = scmp.lt.s32.totalorder %s13, 1
        %s1297 = scalar_select %p1296, %s13, 1
        %s1298 = smul.addr %s1297, 222
        %s1299 = smul.addr %s1298, 4
        %s1300 = scalar_lea.vmem %s1, %s1299
      $region36: #{automad_conv2d_forward.3} parent=31 // pred_fallthru
        _
    $region32: #{automad_conv2d_forward.3} parent=5 // pred_fallthru
      _
  $region6: #{automad_conv2d_forward.3} parent=0 // loop_footer
    %s11 = sadd.s32 1, %s7
  $region7: #{automad_conv2d_forward.3} parent=0 // loop_footer_branch
    %6 = sbr.rel target = $region3
  $region8: #{automad_conv2d_forward.3} parent=0 // loop_exit
    _

</llo_original>
